<compile_context>
chip_gen: v7x
topology: tpu7x:2x2x1
jax: 0.10.0
libtpu: 0.0.40
codegen_flags: <defaults>
</compile_context>

<pallas_src>
import jax
import jax.numpy as jnp
from jax.experimental import pallas as pl
from jax.experimental.pallas import tpu as pltpu

EPS = 1e-5  # nn.BatchNorm1d default eps


def _round_up(n, m=128):
    return ((n + m - 1) // m) * m


def clip_classifier_kernel(x_ref, w1_ref, w2_ref, w3_ref, bn_ref, out_ref):
    B = x_ref.shape[0]
    H1 = w1_ref.shape[1]          # padded to a multiple of 128
    H2 = w2_ref.shape[1]          # padded to a multiple of 128

    x = x_ref[...]                # (B, D)  f32
    w1 = w1_ref[...]              # (D, H1)
    bn = bn_ref[...]              # (4, Hmax): rows = [g1, be1, g2, be2]

    # Reduction row with 1/B folded in: mu / E[h^2] come straight out of the matmul.
    ones_b = jnp.full((1, B), 1.0 / B, dtype=jnp.float32)
    # NOTE(v5e): B==8 is one sublane group, so `jnp.sum(h, axis=0, keepdims=True) / B`
    # on the XLU is a valid alternative to the ones-row MXU reduction; the MXU form is
    # kept as the default (cheaper on v7x's MRB, fine on v6e).

    # ---- Block 1: Linear(D -> H1) (bias cancelled by BN) + BatchNorm1d ---------------
    h = jnp.dot(x, w1, preferred_element_type=jnp.float32)            # (B, H1)
    # Mean of h derived from x (independent of h -> issues concurrently with x @ w1).
    xbar = jnp.dot(ones_b, x, preferred_element_type=jnp.float32)     # (1, D)
    mu = jnp.dot(xbar, w1, preferred_element_type=jnp.float32)        # (1, H1) = E[h]
    m2 = jnp.dot(ones_b, h * h, preferred_element_type=jnp.float32)   # (1, H1) = E[h^2]
    g1, be1 = bn[0:1, :H1], bn[1:2, :H1]
    scale = jax.lax.rsqrt(m2 - mu * mu + EPS) * g1                    # EUP rsqrt
    h = h * scale + (be1 - mu * scale)

    # ---- Block 2: Linear(H1 -> H2) (bias cancelled by BN) + BatchNorm1d + ReLU -------
    h = jnp.dot(h, w2_ref[...], preferred_element_type=jnp.float32)   # (B, H2)
    # Single fused stats matmul: (1, 2*H2) = [E[h] | E[h^2]].
    stats = jnp.dot(ones_b, jnp.concatenate([h, h * h], axis=1),
                    preferred_element_type=jnp.float32)
    mu, m2 = stats[:, :H2], stats[:, H2:]
    g2, be2 = bn[2:3, :H2], bn[3:4, :H2]
    scale = jax.lax.rsqrt(m2 - mu * mu + EPS) * g2
    h = jnp.maximum(h * scale + (be2 - mu * scale), 0.0)              # fused affine + ReLU

    # ---- Head: Linear(H2 -> C_pad), bias=False (lane-padded, unmasked store) ---------
    out_ref[...] = jnp.dot(h, w3_ref[...], preferred_element_type=jnp.float32)


def clip_classifier_forward(x, params):
    """Fused ClipClassifier forward in one gridless Pallas call (training-mode BN)."""
    B, D = x.shape
    H1 = params["w1"].shape[1]
    H2 = params["w2"].shape[1]
    C = params["w3"].shape[1]

    H1p, H2p, Cp = _round_up(H1), _round_up(H2), _round_up(C)
    Hmax = max(H1p, H2p)
    f32 = jnp.float32

    # Zero-pad hidden/output feature dims to lane multiples. Padded features stay
    # exactly zero through BN (gamma=0, beta=0) and contribute nothing downstream
    # (zero weight rows), so the result is bit-for-bit unaffected modulo f32 rounding.
    w1 = jnp.pad(params["w1"].astype(f32), ((0, 0), (0, H1p - H1)))
    w2 = jnp.pad(params["w2"].astype(f32), ((0, H1p - H1), (0, H2p - H2)))
    w3 = jnp.pad(params["w3"].astype(f32), ((0, H2p - H2), (0, Cp - C)))

    def _row(v):
        v = v.reshape(1, -1).astype(f32)
        return jnp.pad(v, ((0, 0), (0, Hmax - v.shape[1])))

    # Sublane-packed BN params: rows [gamma1, beta1, gamma2, beta2], each (1, Hmax).
    bn = jnp.concatenate(
        [_row(params["g1"]), _row(params["be1"]),
         _row(params["g2"]), _row(params["be2"])], axis=0)            # (4, Hmax)

    x = x.astype(f32)

    # Guard the gridless all-resident-in-VMEM design (v7x has 64 MiB physical VMEM).
    resident_bytes = 4 * (x.size + w1.size + w2.size + w3.size + bn.size + B * Cp
                          + B * (H1p + 3 * H2p))        # + intermediates (h, concat)
    assert resident_bytes < 24 * 1024 * 1024, (
        "Batch/feature sizes exceed the single-block VMEM budget; "
        "use a batch-tiled two-pass-BN variant instead.")

    cost = pl.CostEstimate(
        flops=2 * B * (D * H1p + H1p * H2p + H2p * Cp)      # main matmuls
        + 2 * B * D + 2 * D * H1p                           # mean-of-x path
        + 2 * B * (H1p + 2 * H2p)                           # stats reductions
        + 6 * B * (H1p + H2p),                              # affine + ReLU
        transcendentals=H1p + H2p,                          # one rsqrt per BN feature
        bytes_accessed=4 * (x.size + w1.size + w2.size + w3.size + bn.size + B * Cp),
    )

    vmem = pl.BlockSpec(memory_space=pltpu.MemorySpace.VMEM)
    out = pl.pallas_call(
        clip_classifier_kernel,
        out_shape=jax.ShapeDtypeStruct((B, Cp), jnp.float32),
        in_specs=[vmem] * 5,
        out_specs=vmem,
        cost_estimate=cost,
    )(x, w1, w2, w3, bn)
    return out[:, :C]


def init_params(key, input_dim, layers, num_classes):
    """Deterministic synthetic parameters matching the module's shapes."""
    H1, H2 = layers
    ks = jax.random.split(key, 9)
    return {
        "w1":  0.02 * jax.random.normal(ks[0], (input_dim, H1), jnp.float32),
        "b1":  0.01 * jax.random.normal(ks[1], (1, H1), jnp.float32),
        "g1":  1.0 + 0.1 * jax.random.normal(ks[2], (1, H1), jnp.float32),
        "be1": 0.1 * jax.random.normal(ks[3], (1, H1), jnp.float32),
        "w2":  0.02 * jax.random.normal(ks[4], (H1, H2), jnp.float32),
        "b2":  0.01 * jax.random.normal(ks[5], (1, H2), jnp.float32),
        "g2":  1.0 + 0.1 * jax.random.normal(ks[6], (1, H2), jnp.float32),
        "be2": 0.1 * jax.random.normal(ks[7], (1, H2), jnp.float32),
        "w3":  0.02 * jax.random.normal(ks[8], (H2, num_classes), jnp.float32),
    }


def reference_forward(x, p):
    """Plain-JAX reference mirroring the PyTorch forward exactly (training-mode BN,
    two-pass variance, Linear biases included — the kernel's bias drop, padding and
    one-pass variance must match this to tolerance)."""
    h = x @ p["w1"] + p["b1"]
    mu = h.mean(0, keepdims=True)
    var = ((h - mu) ** 2).mean(0, keepdims=True)
    h = (h - mu) / jnp.sqrt(var + EPS) * p["g1"] + p["be1"]
    h = h @ p["w2"] + p["b2"]
    mu = h.mean(0, keepdims=True)
    var = ((h - mu) ** 2).mean(0, keepdims=True)
    h = (h - mu) / jnp.sqrt(var + EPS) * p["g2"] + p["be2"]
    h = jnp.maximum(h, 0.0)
    return h @ p["w3"]


if __name__ == "__main__":
    # Small shapes consistent with the module: input_dim=32, layers=[128, 64], classes=2, batch=8.
    B, D = 8, 32
    layers = [128, 64]
    num_classes = 2

    key = jax.random.PRNGKey(0)
    kx, kp = jax.random.split(key)
    x = jax.random.normal(kx, (B, D), jnp.float32)
    params = init_params(kp, D, layers, num_classes)

    out = clip_classifier_forward(x, params)
    out = jax.block_until_ready(out)
    assert out.shape == (B, num_classes)

    ref = reference_forward(x, params)
    assert jnp.allclose(out, ref, atol=2e-4, rtol=2e-4), "Pallas output mismatch vs reference"

    print("KERNEL_OK")
</pallas_src>

<mosaic_0001>
module attributes {stable_mosaic.version = 11 : i64} {
  func.func @clip_classifier_kernel(%arg0: memref<8x32xf32, #tpu.memory_space<vmem>>, %arg1: memref<32x128xf32, #tpu.memory_space<vmem>>, %arg2: memref<128x128xf32, #tpu.memory_space<vmem>>, %arg3: memref<128x128xf32, #tpu.memory_space<vmem>>, %arg4: memref<4x128xf32, #tpu.memory_space<vmem>>, %arg5: memref<8x128xf32, #tpu.memory_space<vmem>>) attributes {dimension_semantics = [], scalar_prefetch = 0 : i64, scratch_operands = 0 : i64, tpu.core_type = #tpu.core_type<tc>} {
    %c0 = arith.constant 0 : index
    %c0_0 = arith.constant 0 : index
    %0 = vector.load %arg0[%c0, %c0_0] : memref<8x32xf32, #tpu.memory_space<vmem>>, vector<8x32xf32>
    %c0_1 = arith.constant 0 : index
    %c0_2 = arith.constant 0 : index
    %1 = vector.load %arg1[%c0_1, %c0_2] : memref<32x128xf32, #tpu.memory_space<vmem>>, vector<32x128xf32>
    %c0_3 = arith.constant 0 : index
    %c0_4 = arith.constant 0 : index
    %2 = vector.load %arg4[%c0_3, %c0_4] : memref<4x128xf32, #tpu.memory_space<vmem>>, vector<4x128xf32>
    %cst = arith.constant 1.250000e-01 : f32
    %3 = vector.broadcast %cst : f32 to vector<1x8xf32>
    %cst_5 = arith.constant dense<0.000000e+00> : vector<8x128xf32>
    %4 = tpu.matmul %0, %1, %cst_5 {dimension_numbers = #tpu.dot_dimension_numbers<[1], [0], [0], [1], [0, 0, 1, 1], [], []>} : vector<8x32xf32>, vector<32x128xf32>, vector<8x128xf32> -> vector<8x128xf32>
    %cst_6 = arith.constant dense<0.000000e+00> : vector<1x32xf32>
    %5 = tpu.matmul %3, %0, %cst_6 {dimension_numbers = #tpu.dot_dimension_numbers<[1], [0], [0], [1], [0, 0, 1, 1], [], []>} : vector<1x8xf32>, vector<8x32xf32>, vector<1x32xf32> -> vector<1x32xf32>
    %cst_7 = arith.constant dense<0.000000e+00> : vector<1x128xf32>
    %6 = tpu.matmul %5, %1, %cst_7 {dimension_numbers = #tpu.dot_dimension_numbers<[1], [0], [0], [1], [0, 0, 1, 1], [], []>} : vector<1x32xf32>, vector<32x128xf32>, vector<1x128xf32> -> vector<1x128xf32>
    %7 = arith.mulf %4, %4 : vector<8x128xf32>
    %cst_8 = arith.constant dense<0.000000e+00> : vector<1x128xf32>
    %8 = tpu.matmul %3, %7, %cst_8 {dimension_numbers = #tpu.dot_dimension_numbers<[1], [0], [0], [1], [0, 0, 1, 1], [], []>} : vector<1x8xf32>, vector<8x128xf32>, vector<1x128xf32> -> vector<1x128xf32>
    %9 = vector.extract_strided_slice %2 {offsets = [0, 0], sizes = [1, 128], strides = [1, 1]} : vector<4x128xf32> to vector<1x128xf32>
    %10 = vector.extract_strided_slice %2 {offsets = [1, 0], sizes = [1, 128], strides = [1, 1]} : vector<4x128xf32> to vector<1x128xf32>
    %11 = arith.mulf %6, %6 : vector<1x128xf32>
    %12 = arith.subf %8, %11 : vector<1x128xf32>
    %cst_9 = arith.constant 9.99999974E-6 : f32
    %13 = vector.broadcast %cst_9 : f32 to vector<1x128xf32>
    %14 = arith.addf %12, %13 : vector<1x128xf32>
    %15 = math.rsqrt %14 : vector<1x128xf32>
    %16 = arith.mulf %15, %9 : vector<1x128xf32>
    %17 = vector.broadcast %16 : vector<1x128xf32> to vector<8x128xf32>
    %18 = arith.mulf %4, %17 : vector<8x128xf32>
    %19 = arith.mulf %6, %16 : vector<1x128xf32>
    %20 = arith.subf %10, %19 : vector<1x128xf32>
    %21 = vector.broadcast %20 : vector<1x128xf32> to vector<8x128xf32>
    %22 = arith.addf %18, %21 : vector<8x128xf32>
    %c0_10 = arith.constant 0 : index
    %c0_11 = arith.constant 0 : index
    %23 = vector.load %arg2[%c0_10, %c0_11] : memref<128x128xf32, #tpu.memory_space<vmem>>, vector<128x128xf32>
    %cst_12 = arith.constant dense<0.000000e+00> : vector<8x128xf32>
    %24 = tpu.matmul %22, %23, %cst_12 {dimension_numbers = #tpu.dot_dimension_numbers<[1], [0], [0], [1], [0, 0, 1, 1], [], []>} : vector<8x128xf32>, vector<128x128xf32>, vector<8x128xf32> -> vector<8x128xf32>
    %25 = arith.mulf %24, %24 : vector<8x128xf32>
    %26 = tpu.concatenate %24, %25 in 1 : vector<8x128xf32>, vector<8x128xf32> -> vector<8x256xf32>
    %cst_13 = arith.constant dense<0.000000e+00> : vector<1x256xf32>
    %27 = tpu.matmul %3, %26, %cst_13 {dimension_numbers = #tpu.dot_dimension_numbers<[1], [0], [0], [1], [0, 0, 1, 1], [], []>} : vector<1x8xf32>, vector<8x256xf32>, vector<1x256xf32> -> vector<1x256xf32>
    %28 = vector.extract_strided_slice %27 {offsets = [0, 0], sizes = [1, 128], strides = [1, 1]} : vector<1x256xf32> to vector<1x128xf32>
    %29 = vector.extract_strided_slice %27 {offsets = [0, 128], sizes = [1, 128], strides = [1, 1]} : vector<1x256xf32> to vector<1x128xf32>
    %30 = vector.extract_strided_slice %2 {offsets = [2, 0], sizes = [1, 128], strides = [1, 1]} : vector<4x128xf32> to vector<1x128xf32>
    %31 = vector.extract_strided_slice %2 {offsets = [3, 0], sizes = [1, 128], strides = [1, 1]} : vector<4x128xf32> to vector<1x128xf32>
    %32 = arith.mulf %28, %28 : vector<1x128xf32>
    %33 = arith.subf %29, %32 : vector<1x128xf32>
    %cst_14 = arith.constant 9.99999974E-6 : f32
    %34 = vector.broadcast %cst_14 : f32 to vector<1x128xf32>
    %35 = arith.addf %33, %34 : vector<1x128xf32>
    %36 = math.rsqrt %35 : vector<1x128xf32>
    %37 = arith.mulf %36, %30 : vector<1x128xf32>
    %38 = vector.broadcast %37 : vector<1x128xf32> to vector<8x128xf32>
    %39 = arith.mulf %24, %38 : vector<8x128xf32>
    %40 = arith.mulf %28, %37 : vector<1x128xf32>
    %41 = arith.subf %31, %40 : vector<1x128xf32>
    %42 = vector.broadcast %41 : vector<1x128xf32> to vector<8x128xf32>
    %43 = arith.addf %39, %42 : vector<8x128xf32>
    %cst_15 = arith.constant 0.000000e+00 : f32
    %44 = vector.broadcast %cst_15 : f32 to vector<8x128xf32>
    %45 = arith.maximumf %43, %44 : vector<8x128xf32>
    %c0_16 = arith.constant 0 : index
    %c0_17 = arith.constant 0 : index
    %46 = vector.load %arg3[%c0_16, %c0_17] : memref<128x128xf32, #tpu.memory_space<vmem>>, vector<128x128xf32>
    %cst_18 = arith.constant dense<0.000000e+00> : vector<8x128xf32>
    %47 = tpu.matmul %45, %46, %cst_18 {dimension_numbers = #tpu.dot_dimension_numbers<[1], [0], [0], [1], [0, 0, 1, 1], [], []>} : vector<8x128xf32>, vector<128x128xf32>, vector<8x128xf32> -> vector<8x128xf32>
    %c0_19 = arith.constant 0 : index
    %c0_20 = arith.constant 0 : index
    %48 = vector.load %arg5[%c0_19, %c0_20] : memref<8x128xf32, #tpu.memory_space<vmem>>, vector<8x128xf32>
    tpu.vector_store %arg5[%c0_19, %c0_20], %47 {strides = array<i32>} : memref<8x128xf32, #tpu.memory_space<vmem>>, vector<8x128xf32>,
    return
  }
}

</mosaic_0001>

<llo_original>
// kernel: tpu_custom_call.1
$region0: #{tpu_custom_call.1}
  #allocation0 [shape = 'u32[]', space=smem, size = 0x4, offset = 0x4, fixed_abs, tag = 'smem constant byte address 0x4 - core index']
  #allocation1 [shape = 'u32[144,128]{1,0:T(1,128)}', space=vmem, size = 0x12000, scoped, tag = 'internal scratch']
  %s0 = inlined_call_operand.hbm [shape: f32[8,32], index: 0, kind: input, shape index: {}]
  %s1 = inlined_call_operand.hbm [shape: f32[32,128], index: 1, kind: input, shape index: {}]
  %s2 = inlined_call_operand.hbm [shape: f32[128,128], index: 2, kind: input, shape index: {}]
  %s3 = inlined_call_operand.hbm [shape: f32[128,128], index: 3, kind: input, shape index: {}]
  %s4 = inlined_call_operand.vmem [shape: f32[4,128], index: 4, kind: input, shape index: {}]
  %s5 = inlined_call_operand.hbm [shape: f32[8,128], index: 5, kind: output, shape index: {}]
  %s6 = sld [smem:[#allocation0]]
  $region46: #{tpu_custom_call.1} parent=0
    _
  %s8 = ssub.s32 1, %s6
  %s9 = scalar_select 0, %s8, %s6
  $region1: #{tpu_custom_call.1} parent=0
    #allocation2 [shape = 'u8[4096]{0}', space=vmem, size = 0x1000, scoped, tag = 'input window, operand 0, single buffered']
    #allocation3 [shape = 's32[1]{0}', space=sflag, size = 0x4, scoped, tag = 'scoped memory for tpu_custom_call.1']
    #allocation4 [shape = 's32[1]{0}', space=sflag, size = 0x4, scoped, tag = 'scoped memory for tpu_custom_call.1']
    #allocation5 [shape = 'u8[16384]{0}', space=vmem, size = 0x4000, scoped, tag = 'input window, operand 1, single buffered']
    #allocation6 [shape = 's32[1]{0}', space=sflag, size = 0x4, scoped, tag = 'scoped memory for tpu_custom_call.1']
    #allocation7 [shape = 'u8[65536]{0}', space=vmem, size = 0x10000, scoped, tag = 'input window, operand 2, single buffered']
    #allocation8 [shape = 'u8[65536]{0}', space=vmem, size = 0x10000, scoped, tag = 'input window, operand 3, single buffered']
    #allocation9 [shape = 's32[1]{0}', space=sflag, size = 0x4, scoped, tag = 'scoped memory for tpu_custom_call.1']
    #allocation10 [shape = 'u8[4096]{0}', space=vmem, size = 0x1000, scoped, tag = 'output window, operand 0, single buffered']
    %10 = vsyncpa [#allocation3], 0
    %11 = vsyncpa [#allocation6], 0
    %12 = vsyncpa [#allocation9], 0
    %13 = vsyncpa [#allocation4], 0
    // Predicated region
    $region2: #{tpu_custom_call.1} parent=1 // pred_check
      _
    $region3: #{tpu_custom_call.1} parent=1 // pred_check_branch
      %15 = sbr.rel (0) target = $region5
    $region4: #{tpu_custom_call.1} parent=1 // pred_region
      %s17 = ssub.s32 128, 128
      %18 = vsyncadd [#allocation3], %s17
      %s20 = sshll.u32 [#allocation2], 4
      %s21 = int_to_ptr.vmem [resolvable:$true] %s20
      %23 = dma.hbm_to_vmem [thread:$0]  %s0, 128, %s21, [#allocation3]
    $region5: #{tpu_custom_call.1} parent=1 // pred_fallthru
      _
    // Predicated region
    $region6: #{tpu_custom_call.1} parent=1 // pred_check
      _
    $region7: #{tpu_custom_call.1} parent=1 // pred_check_branch
      %25 = sbr.rel (0) target = $region9
    $region8: #{tpu_custom_call.1} parent=1 // pred_region
      %s27 = ssub.s32 512, 512
      %28 = vsyncadd [#allocation6], %s27
      %s29 = sshll.u32 [#allocation5], 4
      %s30 = int_to_ptr.vmem [resolvable:$true] %s29
      %35 = dma.hbm_to_vmem [thread:$0]  %s1, 512, %s30, [#allocation6], 128, 128, 8
    $region9: #{tpu_custom_call.1} parent=1 // pred_fallthru
      _
    // Predicated region
    $region10: #{tpu_custom_call.1} parent=1 // pred_check
      _
    $region11: #{tpu_custom_call.1} parent=1 // pred_check_branch
      %37 = sbr.rel (0) target = $region13
    $region12: #{tpu_custom_call.1} parent=1 // pred_region
      %s39 = ssub.s32 2048, 2048
      %40 = vsyncadd [#allocation6], %s39
      %s41 = sshll.u32 [#allocation7], 4
      %s42 = int_to_ptr.vmem [resolvable:$true] %s41
      %47 = dma.hbm_to_vmem [thread:$0]  %s2, 2048, %s42, [#allocation6], 128, 128, 8
    $region13: #{tpu_custom_call.1} parent=1 // pred_fallthru
      _
    // Predicated region
    $region14: #{tpu_custom_call.1} parent=1 // pred_check
      _
    $region15: #{tpu_custom_call.1} parent=1 // pred_check_branch
      %49 = sbr.rel (0) target = $region17
    $region16: #{tpu_custom_call.1} parent=1 // pred_region
      %s51 = ssub.s32 2048, 2048
      %52 = vsyncadd [#allocation9], %s51
      %s53 = sshll.u32 [#allocation8], 4
      %s54 = int_to_ptr.vmem [resolvable:$true] %s53
      %59 = dma.hbm_to_vmem [thread:$0]  %s3, 2048, %s54, [#allocation9], 128, 128, 8
    $region17: #{tpu_custom_call.1} parent=1 // pred_fallthru
      _
    // Predicated region
    $region18: #{tpu_custom_call.1} parent=1 // pred_check
      _
    $region19: #{tpu_custom_call.1} parent=1 // pred_check_branch
      %61 = sbr.rel (0) target = $region21
    $region20: #{tpu_custom_call.1} parent=1 // pred_region
      _
    $region21: #{tpu_custom_call.1} parent=1 // pred_fallthru
      _
    // Predicated region
    $region22: #{tpu_custom_call.1} parent=1 // pred_check
      _
    $region23: #{tpu_custom_call.1} parent=1 // pred_check_branch
      %63 = sbr.rel (0) target = $region25
    $region24: #{tpu_custom_call.1} parent=1 // pred_region
      %64 = dma.done [#allocation3], 128
    $region25: #{tpu_custom_call.1} parent=1 // pred_fallthru
      _
    // Predicated region
    $region26: #{tpu_custom_call.1} parent=1 // pred_check
      _
    $region27: #{tpu_custom_call.1} parent=1 // pred_check_branch
      %66 = sbr.rel (0) target = $region29
    $region28: #{tpu_custom_call.1} parent=1 // pred_region
      %67 = dma.done [#allocation6], 512
    $region29: #{tpu_custom_call.1} parent=1 // pred_fallthru
      _
    // Predicated region
    $region30: #{tpu_custom_call.1} parent=1 // pred_check
      _
    $region31: #{tpu_custom_call.1} parent=1 // pred_check_branch
      %69 = sbr.rel (0) target = $region33
    $region32: #{tpu_custom_call.1} parent=1 // pred_region
      %70 = dma.done [#allocation6], 2048
    $region33: #{tpu_custom_call.1} parent=1 // pred_fallthru
      _
    // Predicated region
    $region34: #{tpu_custom_call.1} parent=1 // pred_check
      _
    $region35: #{tpu_custom_call.1} parent=1 // pred_check_branch
      %72 = sbr.rel (0) target = $region37
    $region36: #{tpu_custom_call.1} parent=1 // pred_region
      %73 = dma.done [#allocation9], 2048
    $region37: #{tpu_custom_call.1} parent=1 // pred_fallthru
      _
    %v74 = vld [vmem:[#allocation2] sm:$0xff]
    %v75 = vld [vmem:[#allocation5] sm:$0xff]
    %v76 = vld [vmem:[#allocation5 + $0x8] sm:$0xff]
    %v77 = vld [vmem:[#allocation5 + $0x10] sm:$0xff]
    %v78 = vld [vmem:[#allocation5 + $0x18] sm:$0xff]
    %v79 = vld [vmem:[%s4] sm:$0xf]
    %vm80 = vcmask 261120
    %v82 = vsel %vm80, %v74, 0
    %84 = vmatprep.subr.mxu0 0.0
    %85 = vmatpush1.msra.mxu0 %v75
    %86 = vmatprep.subr.mxu0 0.0
    %87 = vmatpush1.msra.mxu0 %v76
    %88 = vmatprep.subr.mxu0 0.0
    %89 = vmatpush1.msra.mxu0 %v77
    %90 = vmatprep.subr.mxu0 0.0
    %91 = vmatpush1.msra.mxu0 %v78
    %92 = vmatprep.subr.mxu0 0.0
    %93 = vmatpush1.msra.mxu0 0.0
    %94 = vmatprep.subr.mxu0 0.0
    %95 = vmatpush1.msra.mxu0 0.0
    %96 = vmatprep.subr.mxu0 0.0
    %97 = vmatpush1.msra.mxu0 0.0
    %98 = vmatprep.subr.mxu0 0.0
    %99 = vmatpush1.msra.mxu0 0.0
    %100 = vmatprep.subr.mxu0 0.0
    %101 = vmatpush1.msra.mxu0 0.0
    %102 = vmatprep.subr.mxu0 0.0
    %103 = vmatpush1.msra.mxu0 0.0
    %104 = vmatprep.subr.mxu0 0.0
    %105 = vmatpush1.msra.mxu0 0.0
    %106 = vmatprep.subr.mxu0 0.0
    %107 = vmatpush1.msra.mxu0 0.0
    %108 = vmatprep.subr.mxu0 0.0
    %109 = vmatpush1.msra.mxu0 0.0
    %110 = vmatprep.subr.mxu0 0.0
    %111 = vmatpush1.msra.mxu0 0.0
    %112 = vmatprep.subr.mxu0 0.0
    %113 = vmatpush1.msra.mxu0 0.0
    %114 = vmatprep.subr.mxu0 0.0
    %115 = vmatpush1.msra.mxu0 0.0
    %116 = vmatprep.subr.mxu0 0.0
    %117 = vmatpush1.msra.mxu0 0.0
    %118 = vmatprep.subr.mxu0 0.0
    %119 = vmatpush1.msra.mxu0 0.0
    %120 = vmatprep.subr.mxu0 0.0
    %121 = vmatpush1.msra.mxu0 0.0
    %122 = vmatprep.subr.mxu0 0.0
    %123 = vmatpush1.msra.mxu0 0.0
    %124 = vmatprep.subr.mxu0 0.0
    %125 = vmatpush1.msra.mxu0 0.0
    %126 = vmatprep.subr.mxu0 0.0
    %127 = vmatpush1.msra.mxu0 0.0
    %128 = vmatprep.subr.mxu0 0.0
    %129 = vmatpush1.msra.mxu0 0.0
    %130 = vmatprep.subr.mxu0 0.0
    %131 = vmatpush1.msra.mxu0 0.0
    %132 = vmatprep.subr.mxu0 0.0
    %133 = vmatpush1.msra.mxu0 0.0
    %134 = vmatprep.subr.mxu0 0.0
    %135 = vmatpush1.msra.mxu0 0.0
    %136 = vmatprep.subr.mxu0 0.0
    %137 = vmatpush1.msra.mxu0 0.0
    %138 = vmatprep.subr.mxu0 0.0
    %139 = vmatpush1.msra.mxu0 0.0
    %140 = vmatprep.subr.mxu0 0.0
    %141 = vmatpush1.msra.mxu0 0.0
    %142 = vmatprep.subr.mxu0 0.0
    %143 = vmatpush1.msra.mxu0 0.0
    %144 = vmatprep.subr.mxu0 0.0
    %145 = vmatpush1.msra.mxu0 0.0
    %146 = vmatprep.subr.mxu0 0.0
    %147 = vmatpush1.msra.mxu0 0.0
    %148 = vmatprep.mubr.f32.mxu0 0.0
    %149 = vmatmul.mubr.f32.gmra.mrb[0].mxu0 %v82
    %v150 = vpop.f32.mrb[0].mxu0
    %v151 = vadd.f32 0.0, %v150
    %v152 = vpop.f32.mrb[0].mxu0
    %153 = vdwg.mxu0
    %vm154 = vcmask 64512
    %v156 = vsel %vm154, 0.125, 0
    %158 = vmatprep.subr.mxu0 0.0
    %159 = vmatpush1.msra.mxu0 %v74
    %160 = vmatprep.subr.mxu0 0.0
    %161 = vmatpush1.msra.mxu0 0.0
    %162 = vmatprep.subr.mxu0 0.0
    %163 = vmatpush1.msra.mxu0 0.0
    %164 = vmatprep.subr.mxu0 0.0
    %165 = vmatpush1.msra.mxu0 0.0
    %166 = vmatprep.subr.mxu0 0.0
    %167 = vmatpush1.msra.mxu0 0.0
    %168 = vmatprep.subr.mxu0 0.0
    %169 = vmatpush1.msra.mxu0 0.0
    %170 = vmatprep.subr.mxu0 0.0
    %171 = vmatpush1.msra.mxu0 0.0
    %172 = vmatprep.subr.mxu0 0.0
    %173 = vmatpush1.msra.mxu0 0.0
    %174 = vmatprep.subr.mxu0 0.0
    %175 = vmatpush1.msra.mxu0 0.0
    %176 = vmatprep.subr.mxu0 0.0
    %177 = vmatpush1.msra.mxu0 0.0
    %178 = vmatprep.subr.mxu0 0.0
    %179 = vmatpush1.msra.mxu0 0.0
    %180 = vmatprep.subr.mxu0 0.0
    %181 = vmatpush1.msra.mxu0 0.0
    %182 = vmatprep.subr.mxu0 0.0
    %183 = vmatpush1.msra.mxu0 0.0
    %184 = vmatprep.subr.mxu0 0.0
    %185 = vmatpush1.msra.mxu0 0.0
    %186 = vmatprep.subr.mxu0 0.0
    %187 = vmatpush1.msra.mxu0 0.0
    %188 = vmatprep.subr.mxu0 0.0
    %189 = vmatpush1.msra.mxu0 0.0
    %190 = vmatprep.subr.mxu0 0.0
    %191 = vmatpush1.msra.mxu0 0.0
    %192 = vmatprep.subr.mxu0 0.0
    %193 = vmatpush1.msra.mxu0 0.0
    %194 = vmatprep.subr.mxu0 0.0
    %195 = vmatpush1.msra.mxu0 0.0
    %196 = vmatprep.subr.mxu0 0.0
    %197 = vmatpush1.msra.mxu0 0.0
    %198 = vmatprep.subr.mxu0 0.0
    %199 = vmatpush1.msra.mxu0 0.0
    %200 = vmatprep.subr.mxu0 0.0
    %201 = vmatpush1.msra.mxu0 0.0
    %202 = vmatprep.subr.mxu0 0.0
    %203 = vmatpush1.msra.mxu0 0.0
    %204 = vmatprep.subr.mxu0 0.0
    %205 = vmatpush1.msra.mxu0 0.0
    %206 = vmatprep.subr.mxu0 0.0
    %207 = vmatpush1.msra.mxu0 0.0
    %208 = vmatprep.subr.mxu0 0.0
    %209 = vmatpush1.msra.mxu0 0.0
    %210 = vmatprep.subr.mxu0 0.0
    %211 = vmatpush1.msra.mxu0 0.0
    %212 = vmatprep.subr.mxu0 0.0
    %213 = vmatpush1.msra.mxu0 0.0
    %214 = vmatprep.subr.mxu0 0.0
    %215 = vmatpush1.msra.mxu0 0.0
    %216 = vmatprep.subr.mxu0 0.0
    %217 = vmatpush1.msra.mxu0 0.0
    %218 = vmatprep.subr.mxu0 0.0
    %219 = vmatpush1.msra.mxu0 0.0
    %220 = vmatprep.subr.mxu0 0.0
    %221 = vmatpush1.msra.mxu0 0.0
    %222 = vmatprep.mubr.f32.mxu0 0.0
    %223 = vmatmul.mubr.f32.gmra.mrb[0].mxu0 %v156
    %v224 = vpop.f32.mrb[0].mxu0
    %v225 = vadd.f32 0.0, %v224
    %v226 = vpop.f32.mrb[0].mxu0
    %227 = vdwg.mxu0
    %v229 = vsel %vm80, %v225, 0
    %231 = vmatprep.subr.mxu0 0.0
    %232 = vmatpush1.msra.mxu0 %v75
    %233 = vmatprep.subr.mxu0 0.0
    %234 = vmatpush1.msra.mxu0 %v76
    %235 = vmatprep.subr.mxu0 0.0
    %236 = vmatpush1.msra.mxu0 %v77
    %237 = vmatprep.subr.mxu0 0.0
    %238 = vmatpush1.msra.mxu0 %v78
    %239 = vmatprep.subr.mxu0 0.0
    %240 = vmatpush1.msra.mxu0 0.0
    %241 = vmatprep.subr.mxu0 0.0
    %242 = vmatpush1.msra.mxu0 0.0
    %243 = vmatprep.subr.mxu0 0.0
    %244 = vmatpush1.msra.mxu0 0.0
    %245 = vmatprep.subr.mxu0 0.0
    %246 = vmatpush1.msra.mxu0 0.0
    %247 = vmatprep.subr.mxu0 0.0
    %248 = vmatpush1.msra.mxu0 0.0
    %249 = vmatprep.subr.mxu0 0.0
    %250 = vmatpush1.msra.mxu0 0.0
    %251 = vmatprep.subr.mxu0 0.0
    %252 = vmatpush1.msra.mxu0 0.0
    %253 = vmatprep.subr.mxu0 0.0
    %254 = vmatpush1.msra.mxu0 0.0
    %255 = vmatprep.subr.mxu0 0.0
    %256 = vmatpush1.msra.mxu0 0.0
    %257 = vmatprep.subr.mxu0 0.0
    %258 = vmatpush1.msra.mxu0 0.0
    %259 = vmatprep.subr.mxu0 0.0
    %260 = vmatpush1.msra.mxu0 0.0
    %261 = vmatprep.subr.mxu0 0.0
    %262 = vmatpush1.msra.mxu0 0.0
    %263 = vmatprep.subr.mxu0 0.0
    %264 = vmatpush1.msra.mxu0 0.0
    %265 = vmatprep.subr.mxu0 0.0
    %266 = vmatpush1.msra.mxu0 0.0
    %267 = vmatprep.subr.mxu0 0.0
    %268 = vmatpush1.msra.mxu0 0.0
    %269 = vmatprep.subr.mxu0 0.0
    %270 = vmatpush1.msra.mxu0 0.0
    %271 = vmatprep.subr.mxu0 0.0
    %272 = vmatpush1.msra.mxu0 0.0
    %273 = vmatprep.subr.mxu0 0.0
    %274 = vmatpush1.msra.mxu0 0.0
    %275 = vmatprep.subr.mxu0 0.0
    %276 = vmatpush1.msra.mxu0 0.0
    %277 = vmatprep.subr.mxu0 0.0
    %278 = vmatpush1.msra.mxu0 0.0
    %279 = vmatprep.subr.mxu0 0.0
    %280 = vmatpush1.msra.mxu0 0.0
    %281 = vmatprep.subr.mxu0 0.0
    %282 = vmatpush1.msra.mxu0 0.0
    %283 = vmatprep.subr.mxu0 0.0
    %284 = vmatpush1.msra.mxu0 0.0
    %285 = vmatprep.subr.mxu0 0.0
    %286 = vmatpush1.msra.mxu0 0.0
    %287 = vmatprep.subr.mxu0 0.0
    %288 = vmatpush1.msra.mxu0 0.0
    %289 = vmatprep.subr.mxu0 0.0
    %290 = vmatpush1.msra.mxu0 0.0
    %291 = vmatprep.subr.mxu0 0.0
    %292 = vmatpush1.msra.mxu0 0.0
    %293 = vmatprep.subr.mxu0 0.0
    %294 = vmatpush1.msra.mxu0 0.0
    %295 = vmatprep.mubr.f32.mxu0 0.0
    %296 = vmatmul.mubr.f32.gmra.mrb[0].mxu0 %v229
    %v297 = vpop.f32.mrb[0].mxu0
    %v298 = vadd.f32 0.0, %v297
    %v299 = vpop.f32.mrb[0].mxu0
    %300 = vdwg.mxu0
    %v301 = vmul.f32 %v151, %v151
    %302 = vmatprep.subr.mxu0 0.0
    %303 = vmatpush1.msra.mxu0 %v301
    %304 = vmatprep.subr.mxu0 0.0
    %305 = vmatpush1.msra.mxu0 0.0
    %306 = vmatprep.subr.mxu0 0.0
    %307 = vmatpush1.msra.mxu0 0.0
    %308 = vmatprep.subr.mxu0 0.0
    %309 = vmatpush1.msra.mxu0 0.0
    %310 = vmatprep.subr.mxu0 0.0
    %311 = vmatpush1.msra.mxu0 0.0
    %312 = vmatprep.subr.mxu0 0.0
    %313 = vmatpush1.msra.mxu0 0.0
    %314 = vmatprep.subr.mxu0 0.0
    %315 = vmatpush1.msra.mxu0 0.0
    %316 = vmatprep.subr.mxu0 0.0
    %317 = vmatpush1.msra.mxu0 0.0
    %318 = vmatprep.subr.mxu0 0.0
    %319 = vmatpush1.msra.mxu0 0.0
    %320 = vmatprep.subr.mxu0 0.0
    %321 = vmatpush1.msra.mxu0 0.0
    %322 = vmatprep.subr.mxu0 0.0
    %323 = vmatpush1.msra.mxu0 0.0
    %324 = vmatprep.subr.mxu0 0.0
    %325 = vmatpush1.msra.mxu0 0.0
    %326 = vmatprep.subr.mxu0 0.0
    %327 = vmatpush1.msra.mxu0 0.0
    %328 = vmatprep.subr.mxu0 0.0
    %329 = vmatpush1.msra.mxu0 0.0
    %330 = vmatprep.subr.mxu0 0.0
    %331 = vmatpush1.msra.mxu0 0.0
    %332 = vmatprep.subr.mxu0 0.0
    %333 = vmatpush1.msra.mxu0 0.0
    %334 = vmatprep.subr.mxu0 0.0
    %335 = vmatpush1.msra.mxu0 0.0
    %336 = vmatprep.subr.mxu0 0.0
    %337 = vmatpush1.msra.mxu0 0.0
    %338 = vmatprep.subr.mxu0 0.0
    %339 = vmatpush1.msra.mxu0 0.0
    %340 = vmatprep.subr.mxu0 0.0
    %341 = vmatpush1.msra.mxu0 0.0
    %342 = vmatprep.subr.mxu0 0.0
    %343 = vmatpush1.msra.mxu0 0.0
    %344 = vmatprep.subr.mxu0 0.0
    %345 = vmatpush1.msra.mxu0 0.0
    %346 = vmatprep.subr.mxu0 0.0
    %347 = vmatpush1.msra.mxu0 0.0
    %348 = vmatprep.subr.mxu0 0.0
    %349 = vmatpush1.msra.mxu0 0.0
    %350 = vmatprep.subr.mxu0 0.0
    %351 = vmatpush1.msra.mxu0 0.0
    %352 = vmatprep.subr.mxu0 0.0
    %353 = vmatpush1.msra.mxu0 0.0
    %354 = vmatprep.subr.mxu0 0.0
    %355 = vmatpush1.msra.mxu0 0.0
    %356 = vmatprep.subr.mxu0 0.0
    %357 = vmatpush1.msra.mxu0 0.0
    %358 = vmatprep.subr.mxu0 0.0
    %359 = vmatpush1.msra.mxu0 0.0
    %360 = vmatprep.subr.mxu0 0.0
    %361 = vmatpush1.msra.mxu0 0.0
    %362 = vmatprep.subr.mxu0 0.0
    %363 = vmatpush1.msra.mxu0 0.0
    %364 = vmatprep.subr.mxu0 0.0
    %365 = vmatpush1.msra.mxu0 0.0
    %366 = vmatprep.mubr.f32.mxu0 0.0
    %367 = vmatmul.mubr.f32.gmra.mrb[0].mxu0 %v156
    %v368 = vpop.f32.mrb[0].mxu0
    %v369 = vadd.f32 0.0, %v368
    %v370 = vpop.f32.mrb[0].mxu0
    %371 = vdwg.mxu0
    %v372 = vmul.f32 %v298, %v298
    %v373 = vsub.f32 %v369, %v372
    %v374 = vadd.f32 %v373, 1e-05
    %v375 = vrsqrt.pop %v374
    %v376 = vmul.f32 %v375, %v79
    %v377 = vlaneseq
    %v378 = vshrl.u32 %v377, 7
    %v379 = vsub.s32 0, %v378
    %v380 = vrot.slane %v376, %v379
    %v381 = vmul.f32 %v151, %v380
    %v382 = vmul.f32 %v298, %v376
    %v384 = vrot.slane %v382, 7
    %v386 = vsub.f32 %v79, %v384
    %v387 = vlaneseq
    %v388 = vshrl.u32 %v387, 7
    %v389 = vsub.s32 1, %v388
    %v390 = vrot.slane %v386, %v389
    %v391 = vadd.f32 %v381, %v390
    %v392 = vld [vmem:[#allocation7] sm:$0xff]
    %v393 = vld [vmem:[#allocation7 + $0x8] sm:$0xff]
    %v394 = vld [vmem:[#allocation7 + $0x10] sm:$0xff]
    %v395 = vld [vmem:[#allocation7 + $0x18] sm:$0xff]
    %v396 = vld [vmem:[#allocation7 + $0x20] sm:$0xff]
    %v397 = vld [vmem:[#allocation7 + $0x28] sm:$0xff]
    %v398 = vld [vmem:[#allocation7 + $0x30] sm:$0xff]
    %v399 = vld [vmem:[#allocation7 + $0x38] sm:$0xff]
    %v400 = vld [vmem:[#allocation7 + $0x40] sm:$0xff]
    %v401 = vld [vmem:[#allocation7 + $0x48] sm:$0xff]
    %v402 = vld [vmem:[#allocation7 + $0x50] sm:$0xff]
    %v403 = vld [vmem:[#allocation7 + $0x58] sm:$0xff]
    %v404 = vld [vmem:[#allocation7 + $0x60] sm:$0xff]
    %v405 = vld [vmem:[#allocation7 + $0x68] sm:$0xff]
    %v406 = vld [vmem:[#allocation7 + $0x70] sm:$0xff]
    %v407 = vld [vmem:[#allocation7 + $0x78] sm:$0xff]
    %408 = vmatprep.subr.mxu0 0.0
    %409 = vmatpush1.msra.mxu0 %v392
    %410 = vmatprep.subr.mxu0 0.0
    %411 = vmatpush1.msra.mxu0 %v393
    %412 = vmatprep.subr.mxu0 0.0
    %413 = vmatpush1.msra.mxu0 %v394
    %414 = vmatprep.subr.mxu0 0.0
    %415 = vmatpush1.msra.mxu0 %v395
    %416 = vmatprep.subr.mxu0 0.0
    %417 = vmatpush1.msra.mxu0 %v396
    %418 = vmatprep.subr.mxu0 0.0
    %419 = vmatpush1.msra.mxu0 %v397
    %420 = vmatprep.subr.mxu0 0.0
    %421 = vmatpush1.msra.mxu0 %v398
    %422 = vmatprep.subr.mxu0 0.0
    %423 = vmatpush1.msra.mxu0 %v399
    %424 = vmatprep.subr.mxu0 0.0
    %425 = vmatpush1.msra.mxu0 %v400
    %426 = vmatprep.subr.mxu0 0.0
    %427 = vmatpush1.msra.mxu0 %v401
    %428 = vmatprep.subr.mxu0 0.0
    %429 = vmatpush1.msra.mxu0 %v402
    %430 = vmatprep.subr.mxu0 0.0
    %431 = vmatpush1.msra.mxu0 %v403
    %432 = vmatprep.subr.mxu0 0.0
    %433 = vmatpush1.msra.mxu0 %v404
    %434 = vmatprep.subr.mxu0 0.0
    %435 = vmatpush1.msra.mxu0 %v405
    %436 = vmatprep.subr.mxu0 0.0
    %437 = vmatpush1.msra.mxu0 %v406
    %438 = vmatprep.subr.mxu0 0.0
    %439 = vmatpush1.msra.mxu0 %v407
    %440 = vmatprep.subr.mxu0 0.0
    %441 = vmatpush1.msra.mxu0 0.0
    %442 = vmatprep.subr.mxu0 0.0
    %443 = vmatpush1.msra.mxu0 0.0
    %444 = vmatprep.subr.mxu0 0.0
    %445 = vmatpush1.msra.mxu0 0.0
    %446 = vmatprep.subr.mxu0 0.0
    %447 = vmatpush1.msra.mxu0 0.0
    %448 = vmatprep.subr.mxu0 0.0
    %449 = vmatpush1.msra.mxu0 0.0
    %450 = vmatprep.subr.mxu0 0.0
    %451 = vmatpush1.msra.mxu0 0.0
    %452 = vmatprep.subr.mxu0 0.0
    %453 = vmatpush1.msra.mxu0 0.0
    %454 = vmatprep.subr.mxu0 0.0
    %455 = vmatpush1.msra.mxu0 0.0
    %456 = vmatprep.subr.mxu0 0.0
    %457 = vmatpush1.msra.mxu0 0.0
    %458 = vmatprep.subr.mxu0 0.0
    %459 = vmatpush1.msra.mxu0 0.0
    %460 = vmatprep.subr.mxu0 0.0
    %461 = vmatpush1.msra.mxu0 0.0
    %462 = vmatprep.subr.mxu0 0.0
    %463 = vmatpush1.msra.mxu0 0.0
    %464 = vmatprep.subr.mxu0 0.0
    %465 = vmatpush1.msra.mxu0 0.0
    %466 = vmatprep.subr.mxu0 0.0
    %467 = vmatpush1.msra.mxu0 0.0
    %468 = vmatprep.subr.mxu0 0.0
    %469 = vmatpush1.msra.mxu0 0.0
    %470 = vmatprep.subr.mxu0 0.0
    %471 = vmatpush1.msra.mxu0 0.0
    %472 = vmatprep.mubr.f32.mxu0 0.0
    %473 = vmatmul.mubr.f32.gmra.mrb[0].mxu0 %v391
    %v474 = vpop.f32.mrb[0].mxu0
    %v475 = vadd.f32 0.0, %v474
    %v476 = vpop.f32.mrb[0].mxu0
    %477 = vdwg.mxu0
    %v478 = vmul.f32 %v475, %v475
    %479 = vmatprep.subr.mxu0 %v478
    %480 = vmatpush1.msra.mxu0 %v475
    %481 = vmatprep.subr.mxu0 0.0
    %482 = vmatpush1.msra.mxu0 0.0
    %483 = vmatprep.subr.mxu0 0.0
    %484 = vmatpush1.msra.mxu0 0.0
    %485 = vmatprep.subr.mxu0 0.0
    %486 = vmatpush1.msra.mxu0 0.0
    %487 = vmatprep.subr.mxu0 0.0
    %488 = vmatpush1.msra.mxu0 0.0
    %489 = vmatprep.subr.mxu0 0.0
    %490 = vmatpush1.msra.mxu0 0.0
    %491 = vmatprep.subr.mxu0 0.0
    %492 = vmatpush1.msra.mxu0 0.0
    %493 = vmatprep.subr.mxu0 0.0
    %494 = vmatpush1.msra.mxu0 0.0
    %495 = vmatprep.subr.mxu0 0.0
    %496 = vmatpush1.msra.mxu0 0.0
    %497 = vmatprep.subr.mxu0 0.0
    %498 = vmatpush1.msra.mxu0 0.0
    %499 = vmatprep.subr.mxu0 0.0
    %500 = vmatpush1.msra.mxu0 0.0
    %501 = vmatprep.subr.mxu0 0.0
    %502 = vmatpush1.msra.mxu0 0.0
    %503 = vmatprep.subr.mxu0 0.0
    %504 = vmatpush1.msra.mxu0 0.0
    %505 = vmatprep.subr.mxu0 0.0
    %506 = vmatpush1.msra.mxu0 0.0
    %507 = vmatprep.subr.mxu0 0.0
    %508 = vmatpush1.msra.mxu0 0.0
    %509 = vmatprep.subr.mxu0 0.0
    %510 = vmatpush1.msra.mxu0 0.0
    %511 = vmatprep.subr.mxu0 0.0
    %512 = vmatpush1.msra.mxu0 0.0
    %513 = vmatprep.subr.mxu0 0.0
    %514 = vmatpush1.msra.mxu0 0.0
    %515 = vmatprep.subr.mxu0 0.0
    %516 = vmatpush1.msra.mxu0 0.0
    %517 = vmatprep.subr.mxu0 0.0
    %518 = vmatpush1.msra.mxu0 0.0
    %519 = vmatprep.subr.mxu0 0.0
    %520 = vmatpush1.msra.mxu0 0.0
    %521 = vmatprep.subr.mxu0 0.0
    %522 = vmatpush1.msra.mxu0 0.0
    %523 = vmatprep.subr.mxu0 0.0
    %524 = vmatpush1.msra.mxu0 0.0
    %525 = vmatprep.subr.mxu0 0.0
    %526 = vmatpush1.msra.mxu0 0.0
    %527 = vmatprep.subr.mxu0 0.0
    %528 = vmatpush1.msra.mxu0 0.0
    %529 = vmatprep.subr.mxu0 0.0
    %530 = vmatpush1.msra.mxu0 0.0
    %531 = vmatprep.subr.mxu0 0.0
    %532 = vmatpush1.msra.mxu0 0.0
    %533 = vmatprep.subr.mxu0 0.0
    %534 = vmatpush1.msra.mxu0 0.0
    %535 = vmatprep.subr.mxu0 0.0
    %536 = vmatpush1.msra.mxu0 0.0
    %537 = vmatprep.subr.mxu0 0.0
    %538 = vmatpush1.msra.mxu0 0.0
    %539 = vmatprep.subr.mxu0 0.0
    %540 = vmatpush1.msra.mxu0 0.0
    %541 = vmatprep.subr.mxu0 0.0
    %542 = vmatpush1.msra.mxu0 0.0
    %543 = vmatprep.mubr.f32.mxu0 0.0
    %544 = vmatmul.mubr.f32.gmra.mrb[0].mxu0 %v156
    %v545 = vpop.f32.mrb[0].mxu0
    %v546 = vadd.f32 0.0, %v545
    %v547 = vpop.f32.mrb[0].mxu0
    %v548 = vadd.f32 0.0, %v547
    %549 = vdwg.mxu0
    %v550 = vmul.f32 %v546, %v546
    %v551 = vsub.f32 %v548, %v550
    %v552 = vadd.f32 %v551, 1e-05
    %v553 = vrsqrt.pop %v552
    %v555 = vrot.slane %v79, 2
    %v557 = vmul.f32 %v553, %v555
    %v558 = vlaneseq
    %v559 = vshrl.u32 %v558, 7
    %v560 = vsub.s32 0, %v559
    %v561 = vrot.slane %v557, %v560
    %v562 = vmul.f32 %v475, %v561
    %v563 = vmul.f32 %v546, %v557
    %v565 = vrot.slane %v563, 5
    %v567 = vsub.f32 %v79, %v565
    %v568 = vlaneseq
    %v569 = vshrl.u32 %v568, 7
    %v570 = vsub.s32 3, %v569
    %v571 = vrot.slane %v567, %v570
    %v572 = vadd.f32 %v562, %v571
    %v573 = vmax.f32 %v572, 0.0
    %v574 = vld [vmem:[#allocation8] sm:$0xff]
    %v575 = vld [vmem:[#allocation8 + $0x8] sm:$0xff]
    %v576 = vld [vmem:[#allocation8 + $0x10] sm:$0xff]
    %v577 = vld [vmem:[#allocation8 + $0x18] sm:$0xff]
    %v578 = vld [vmem:[#allocation8 + $0x20] sm:$0xff]
    %v579 = vld [vmem:[#allocation8 + $0x28] sm:$0xff]
    %v580 = vld [vmem:[#allocation8 + $0x30] sm:$0xff]
    %v581 = vld [vmem:[#allocation8 + $0x38] sm:$0xff]
    %v582 = vld [vmem:[#allocation8 + $0x40] sm:$0xff]
    %v583 = vld [vmem:[#allocation8 + $0x48] sm:$0xff]
    %v584 = vld [vmem:[#allocation8 + $0x50] sm:$0xff]
    %v585 = vld [vmem:[#allocation8 + $0x58] sm:$0xff]
    %v586 = vld [vmem:[#allocation8 + $0x60] sm:$0xff]
    %v587 = vld [vmem:[#allocation8 + $0x68] sm:$0xff]
    %v588 = vld [vmem:[#allocation8 + $0x70] sm:$0xff]
    %v589 = vld [vmem:[#allocation8 + $0x78] sm:$0xff]
    %590 = vmatprep.subr.mxu0 0.0
    %591 = vmatpush1.msra.mxu0 %v574
    %592 = vmatprep.subr.mxu0 0.0
    %593 = vmatpush1.msra.mxu0 %v575
    %594 = vmatprep.subr.mxu0 0.0
    %595 = vmatpush1.msra.mxu0 %v576
    %596 = vmatprep.subr.mxu0 0.0
    %597 = vmatpush1.msra.mxu0 %v577
    %598 = vmatprep.subr.mxu0 0.0
    %599 = vmatpush1.msra.mxu0 %v578
    %600 = vmatprep.subr.mxu0 0.0
    %601 = vmatpush1.msra.mxu0 %v579
    %602 = vmatprep.subr.mxu0 0.0
    %603 = vmatpush1.msra.mxu0 %v580
    %604 = vmatprep.subr.mxu0 0.0
    %605 = vmatpush1.msra.mxu0 %v581
    %606 = vmatprep.subr.mxu0 0.0
    %607 = vmatpush1.msra.mxu0 %v582
    %608 = vmatprep.subr.mxu0 0.0
    %609 = vmatpush1.msra.mxu0 %v583
    %610 = vmatprep.subr.mxu0 0.0
    %611 = vmatpush1.msra.mxu0 %v584
    %612 = vmatprep.subr.mxu0 0.0
    %613 = vmatpush1.msra.mxu0 %v585
    %614 = vmatprep.subr.mxu0 0.0
    %615 = vmatpush1.msra.mxu0 %v586
    %616 = vmatprep.subr.mxu0 0.0
    %617 = vmatpush1.msra.mxu0 %v587
    %618 = vmatprep.subr.mxu0 0.0
    %619 = vmatpush1.msra.mxu0 %v588
    %620 = vmatprep.subr.mxu0 0.0
    %621 = vmatpush1.msra.mxu0 %v589
    %622 = vmatprep.subr.mxu0 0.0
    %623 = vmatpush1.msra.mxu0 0.0
    %624 = vmatprep.subr.mxu0 0.0
    %625 = vmatpush1.msra.mxu0 0.0
    %626 = vmatprep.subr.mxu0 0.0
    %627 = vmatpush1.msra.mxu0 0.0
    %628 = vmatprep.subr.mxu0 0.0
    %629 = vmatpush1.msra.mxu0 0.0
    %630 = vmatprep.subr.mxu0 0.0
    %631 = vmatpush1.msra.mxu0 0.0
    %632 = vmatprep.subr.mxu0 0.0
    %633 = vmatpush1.msra.mxu0 0.0
    %634 = vmatprep.subr.mxu0 0.0
    %635 = vmatpush1.msra.mxu0 0.0
    %636 = vmatprep.subr.mxu0 0.0
    %637 = vmatpush1.msra.mxu0 0.0
    %638 = vmatprep.subr.mxu0 0.0
    %639 = vmatpush1.msra.mxu0 0.0
    %640 = vmatprep.subr.mxu0 0.0
    %641 = vmatpush1.msra.mxu0 0.0
    %642 = vmatprep.subr.mxu0 0.0
    %643 = vmatpush1.msra.mxu0 0.0
    %644 = vmatprep.subr.mxu0 0.0
    %645 = vmatpush1.msra.mxu0 0.0
    %646 = vmatprep.subr.mxu0 0.0
    %647 = vmatpush1.msra.mxu0 0.0
    %648 = vmatprep.subr.mxu0 0.0
    %649 = vmatpush1.msra.mxu0 0.0
    %650 = vmatprep.subr.mxu0 0.0
    %651 = vmatpush1.msra.mxu0 0.0
    %652 = vmatprep.subr.mxu0 0.0
    %653 = vmatpush1.msra.mxu0 0.0
    %654 = vmatprep.mubr.f32.mxu0 0.0
    %655 = vmatmul.mubr.f32.gmra.mrb[0].mxu0 %v573
    %v656 = vpop.f32.mrb[0].mxu0
    %v657 = vadd.f32 0.0, %v656
    %v658 = vpop.f32.mrb[0].mxu0
    %659 = vdwg.mxu0
    %660 = vst [vmem:[#allocation10] sm:$0xff] %v657
    // Predicated region
    $region38: #{tpu_custom_call.1} parent=1 // pred_check
      _
    $region39: #{tpu_custom_call.1} parent=1 // pred_check_branch
      %662 = sbr.rel (0) target = $region41
    $region40: #{tpu_custom_call.1} parent=1 // pred_region
      %s664 = ssub.s32 128, 128
      %665 = vsyncadd [#allocation4], %s664
      %s667 = sshll.u32 [#allocation10], 4
      %s668 = int_to_ptr.vmem [resolvable:$true] %s667
      %670 = dma.vmem_to_hbm [thread:$0]  %s668, 128, %s5, [#allocation4]
    $region41: #{tpu_custom_call.1} parent=1 // pred_fallthru
      _
    // Predicated region
    $region42: #{tpu_custom_call.1} parent=1 // pred_check
      _
    $region43: #{tpu_custom_call.1} parent=1 // pred_check_branch
      %672 = sbr.rel (0) target = $region45
    $region44: #{tpu_custom_call.1} parent=1 // pred_region
      %673 = dma.done [#allocation4], 128
    $region45: #{tpu_custom_call.1} parent=1 // pred_fallthru
      _
    %674 = vsyncpa [#allocation3], 1
    %675 = vsyncpa [#allocation6], 1
    %676 = vsyncpa [#allocation9], 1
    %677 = vsyncpa [#allocation4], 1

</llo_original>
